<compile_context>
chip_gen: v7x
topology: tpu7x:2x2x1
jax: 0.10.0
libtpu: 0.0.40
codegen_flags: <defaults>
</compile_context>

<pallas_src>
import jax
import jax.numpy as jnp
from jax.experimental import pallas as pl
from jax.experimental.pallas import tpu as pltpu

_LANE_CHOICES = (1024, 512, 256, 128)   # lane-dense last dims (multiples of 128)


def _make_fakequant_kernel(qmin: float, qmax: float, symmetric: bool):
    def kernel(scale_ref, zp_ref, x_ref, o_ref):
        scale = scale_ref[0]
        x = x_ref[...].astype(jnp.float32)        # in-register upcast; HBM keeps orig dtype
        # Exact divide (PyTorch parity).  HBM-bound kernel: per-element compute
        # is fully hidden under DMA, so this costs nothing vs x * (1/scale).
        x_scaled = x / scale
        if not symmetric:
            x_scaled = x_scaled + zp_ref[0]
        x_quant = jnp.clip(jnp.round(x_scaled), qmin, qmax)
        if symmetric:
            o_ref[...] = (x_quant * scale).astype(o_ref.dtype)          # zero_point == 0
        else:
            o_ref[...] = ((x_quant - zp_ref[0]) * scale).astype(o_ref.dtype)

    return kernel


def _block_byte_budget():
    """Per-input-block byte budget, generation-aware.

    v6e / v7x: 4 MiB blocks (double-buffered in+out ~16 MiB < 32 MiB default
    scoped VMEM; v7x physical cap 64 MiB).  v5e / unknown: 2 MiB blocks
    (~8 MiB total, inside the 16 MiB default scoped VMEM).
    """
    try:
        kind = jax.devices()[0].device_kind.lower()
    except Exception:
        kind = ""
    if ("v6" in kind) or ("v7" in kind) or ("tpu7" in kind):
        return 4 << 20
    return 2 << 20


def _pick_tile_rows(rows: int, lane: int, itemsize: int) -> int:
    budget = _block_byte_budget()
    # Rows per block from a byte budget -> constant per-step DMA bytes across
    # dtypes (bf16 gets 2x the rows of f32 for free VMEM-wise).
    max_rows = max(8, (budget // (lane * itemsize)) // 8 * 8)
    if rows <= 8:
        return rows                       # full-array block (legal: equals array dim)
    # Guarantee >= 2 row-blocks so ("parallel",) can shard across v7x's 2 TCs.
    half = (rows + 1) // 2
    half = ((half + 7) // 8) * 8
    return int(min(max_rows, half))


def _fake_quantize_2d(x2d, scale_arr, zp_arr, qmin, qmax, symmetric, donate_input):
    rows, lane = x2d.shape
    itemsize = x2d.dtype.itemsize
    tile_r = _pick_tile_rows(rows, lane, itemsize)
    grid = (pl.cdiv(rows, tile_r),)

    nbytes = rows * lane * itemsize
    cost = pl.CostEstimate(flops=6 * rows * lane, transcendentals=0,
                           bytes_accessed=2 * nbytes)

    # Deepen input prefetch only when there is a real pipeline to fill.
    x_pipeline = pl.Buffered(3) if grid[0] >= 4 else None
    extra = {"input_output_aliases": {2: 0}} if donate_input else {}

    return pl.pallas_call(
        _make_fakequant_kernel(qmin, qmax, symmetric),
        out_shape=jax.ShapeDtypeStruct((rows, lane), x2d.dtype),
        grid=grid,
        in_specs=[
            pl.BlockSpec(memory_space=pltpu.SMEM),            # scale (1,)
            pl.BlockSpec(memory_space=pltpu.SMEM),            # zero_point (1,)
            pl.BlockSpec((tile_r, lane), lambda i: (i, 0),
                         pipeline_mode=x_pipeline),           # x tile
        ],
        out_specs=pl.BlockSpec((tile_r, lane), lambda i: (i, 0)),
        compiler_params=pltpu.CompilerParams(
            dimension_semantics=("parallel",)),
        cost_estimate=cost,
        **extra,
    )(scale_arr, zp_arr, x2d)


def _dequant_reference(x, scale, zero_point, qmin, qmax, symmetric):
    """Pure-JAX math (used for the ragged tail and for test references)."""
    xs = x.astype(jnp.float32) / scale
    if not symmetric:
        xs = xs + zero_point
    xq = jnp.clip(jnp.round(xs), qmin, qmax)
    return (xq - zero_point) * scale


def fake_quantize(x, scale, zero_point, *, num_bits=8, symmetric=True,
                  donate_input=False):
    """Fake-quantization forward pass (matches FakeQuantizer.forward values)."""
    if symmetric:
        qmin = float(-(2 ** (num_bits - 1)))
        qmax = float(2 ** (num_bits - 1) - 1)
    else:
        qmin = 0.0
        qmax = float(2 ** num_bits - 1)

    orig_shape = x.shape
    orig_dtype = x.dtype
    n = x.size

    scale_arr = jnp.asarray(scale, jnp.float32).reshape(1)
    zp_arr = jnp.asarray(zero_point, jnp.float32).reshape(1)

    # Lane-dense layout with zero padding copies: widest multiple-of-128 lane
    # width that divides numel; contiguous reshape is free.
    lane = next((l for l in _LANE_CHOICES if n % l == 0), None)

    if lane is not None:
        x2d = x.reshape(-1, lane)
        out2d = _fake_quantize_2d(x2d, scale_arr, zp_arr, qmin, qmax, symmetric,
                                  donate_input)
        return out2d.reshape(orig_shape)

    # Ragged element count (numel % 128 != 0, rare): kernel on the 1024-aligned
    # prefix, pure-JAX math on the <1024-element tail.  No full-tensor pad/slice.
    xf = x.reshape(-1)
    n_main = (n // 1024) * 1024
    if n_main == 0:  # tiny tensor, not worth a kernel launch
        return _dequant_reference(x, scale_arr[0], zp_arr[0], qmin, qmax,
                                  symmetric).astype(orig_dtype)
    main = _fake_quantize_2d(xf[:n_main].reshape(-1, 1024), scale_arr, zp_arr,
                             qmin, qmax, symmetric, donate_input=False)
    tail = _dequant_reference(xf[n_main:], scale_arr[0], zp_arr[0], qmin, qmax,
                              symmetric).astype(orig_dtype)
    return jnp.concatenate([main.reshape(-1), tail]).reshape(orig_shape)


def fake_quantize_reference(x, scale, zero_point, *, num_bits=8, symmetric=True):
    """Pure-JAX reference, a direct transcription of the PyTorch forward."""
    if symmetric:
        qmin = -(2 ** (num_bits - 1))
        qmax = 2 ** (num_bits - 1) - 1
    else:
        qmin = 0
        qmax = 2 ** num_bits - 1
    return _dequant_reference(x, jnp.float32(scale), jnp.float32(zero_point),
                              qmin, qmax, symmetric).astype(x.dtype)


if __name__ == "__main__":
    key = jax.random.PRNGKey(0)
    k1, k2, k3 = jax.random.split(key, 3)

    # 1) Small NCHW-style activation (batch=2, channels=4, spatial 16x16), f32,
    #    symmetric int8 with a power-of-two scale.
    x1 = jax.random.normal(k1, (2, 4, 16, 16), dtype=jnp.float32) * 3.0
    out1 = jax.block_until_ready(
        fake_quantize(x1, 0.25, 0.0, num_bits=8, symmetric=True))
    ref1 = fake_quantize_reference(x1, 0.25, 0.0, num_bits=8, symmetric=True)
    assert out1.shape == x1.shape and out1.dtype == x1.dtype
    assert float(jnp.max(jnp.abs(out1 - ref1))) < 1e-6

    # 2) Asymmetric uint8 with a non-power-of-two scale and nonzero zero_point
    #    (exact in-kernel divide keeps PyTorch parity).
    x2 = jax.random.normal(k2, (2, 4, 16, 16), dtype=jnp.float32) * 0.7 + 0.3
    out2 = jax.block_until_ready(
        fake_quantize(x2, 0.0123, 7.0, num_bits=8, symmetric=False))
    ref2 = fake_quantize_reference(x2, 0.0123, 7.0, num_bits=8, symmetric=False)
    assert float(jnp.max(jnp.abs(out2 - ref2))) < 1e-6

    # 3) Ragged element count (7*300 = 2100, not a multiple of 128): kernel on
    #    the 1024-aligned prefix + pure-JAX tail, no pad/slice copies.
    x3 = jax.random.normal(k3, (7, 300), dtype=jnp.float32) * 2.0
    out3 = jax.block_until_ready(
        fake_quantize(x3, 0.125, 0.0, num_bits=4, symmetric=True))
    ref3 = fake_quantize_reference(x3, 0.125, 0.0, num_bits=4, symmetric=True)
    assert out3.shape == x3.shape
    assert float(jnp.max(jnp.abs(out3 - ref3))) < 1e-6

    # 4) bf16 input (tile rows auto-scale with dtype; f32 math + in-kernel cast).
    x4 = (jax.random.normal(k1, (4, 8, 32), dtype=jnp.float32) * 3.0).astype(jnp.bfloat16)
    out4 = jax.block_until_ready(
        fake_quantize(x4, 0.25, 0.0, num_bits=8, symmetric=True))
    ref4 = fake_quantize_reference(x4, 0.25, 0.0, num_bits=8, symmetric=True)
    assert out4.dtype == jnp.bfloat16
    assert float(jnp.max(jnp.abs(out4.astype(jnp.float32)
                                 - ref4.astype(jnp.float32)))) < 1e-2

    print("KERNEL_OK")
</pallas_src>

<mosaic_0001>
module attributes {stable_mosaic.version = 11 : i64} {
  func.func @kernel(%arg0: i32, %arg1: memref<1xf32, #tpu.memory_space<smem>>, %arg2: memref<1xf32, #tpu.memory_space<smem>>, %arg3: memref<2x1024xf32, #tpu.memory_space<vmem>>, %arg4: memref<2x1024xf32, #tpu.memory_space<vmem>>) attributes {dimension_semantics = [#tpu.dimension_semantics<parallel>], iteration_bounds = array<i64: 1>, scalar_prefetch = 0 : i64, scratch_operands = 0 : i64, tpu.core_type = #tpu.core_type<tc>, window_params = [{transform_indices = @transform_0, window_bounds = array<i64: 1>}, {transform_indices = @transform_1, window_bounds = array<i64: 1>}, {transform_indices = @transform_2, window_bounds = array<i64: 2, 1024>}, {transform_indices = @transform_3, window_bounds = array<i64: 2, 1024>}]} {
    %c0 = arith.constant 0 : index
    %0 = memref.load %arg1[%c0] : memref<1xf32, #tpu.memory_space<smem>>
    %c0_0 = arith.constant 0 : index
    %c0_1 = arith.constant 0 : index
    %1 = vector.load %arg3[%c0_0, %c0_1] : memref<2x1024xf32, #tpu.memory_space<vmem>>, vector<2x1024xf32>
    %2 = vector.broadcast %0 : f32 to vector<2x1024xf32>
    %3 = arith.divf %1, %2 : vector<2x1024xf32>
    %4 = math.roundeven %3 : vector<2x1024xf32>
    %cst = arith.constant -1.280000e+02 : f32
    %cst_2 = arith.constant 1.270000e+02 : f32
    %5 = vector.broadcast %cst : f32 to vector<2x1024xf32>
    %6 = arith.maximumf %5, %4 : vector<2x1024xf32>
    %7 = vector.broadcast %cst_2 : f32 to vector<2x1024xf32>
    %8 = arith.minimumf %7, %6 : vector<2x1024xf32>
    %9 = vector.broadcast %0 : f32 to vector<2x1024xf32>
    %10 = arith.mulf %8, %9 : vector<2x1024xf32>
    %c0_3 = arith.constant 0 : index
    %c0_4 = arith.constant 0 : index
    %11 = vector.load %arg4[%c0_3, %c0_4] : memref<2x1024xf32, #tpu.memory_space<vmem>>, vector<2x1024xf32>
    tpu.vector_store %arg4[%c0_3, %c0_4], %10 {strides = array<i32>} : memref<2x1024xf32, #tpu.memory_space<vmem>>, vector<2x1024xf32>,
    return
  }
  func.func @transform_0(%arg0: i32) -> i32 {
    %c0_i32 = arith.constant 0 : i32
    %c0_i32_0 = arith.constant 0 : i32
    return %c0_i32 : i32
  }
  func.func @transform_1(%arg0: i32) -> i32 {
    %c0_i32 = arith.constant 0 : i32
    %c0_i32_0 = arith.constant 0 : i32
    return %c0_i32 : i32
  }
  func.func @transform_2(%arg0: i32) -> (i32, i32) {
    %c0_i32 = arith.constant 0 : i32
    %c0_i32_0 = arith.constant 0 : i32
    return %arg0, %c0_i32 : i32, i32
  }
  func.func @transform_3(%arg0: i32) -> (i32, i32) {
    %c0_i32 = arith.constant 0 : i32
    %c0_i32_0 = arith.constant 0 : i32
    return %arg0, %c0_i32 : i32, i32
  }
}

</mosaic_0001>

<llo_original>
// kernel: tpu_custom_call.1
$region0: #{tpu_custom_call.1}
  #allocation0 [shape = 'u32[]', space=smem, size = 0x4, offset = 0x4, fixed_abs, tag = 'smem constant byte address 0x4 - core index']
  #allocation1 [shape = 'u32[144,128]{1,0:T(1,128)}', space=vmem, size = 0x12000, scoped, tag = 'internal scratch']
  #allocation2 [shape = 'f32[1]{0:T(128)S(6)}', space=smem, size = 0x200, scoped, tag = 'scoped memory for tpu_custom_call.1']
  #allocation3 [shape = 'f32[1]{0:T(128)S(6)}', space=smem, size = 0x200, scoped, tag = 'scoped memory for tpu_custom_call.1']
  %s0 = inlined_call_operand.<no memory space> [shape: f32[1], index: 0, kind: input, shape index: {}]
  %s1 = inlined_call_operand.<no memory space> [shape: f32[1], index: 1, kind: input, shape index: {}]
  %s2 = inlined_call_operand.hbm [shape: f32[2,1024], index: 2, kind: input, shape index: {}]
  %s3 = inlined_call_operand.hbm [shape: f32[2,1024], index: 3, kind: output, shape index: {}]
  %s4 = sld [smem:[#allocation0]]
  $region26: #{tpu_custom_call.1} parent=0
    _
  %s6 = ssub.s32 1, %s4
  %s7 = scalar_select 0, %s6, %s4
  %8 = sst [smem:[#allocation2]] %s0
  %9 = sst [smem:[#allocation3]] %s1
  $region1: #{tpu_custom_call.1} parent=0
    #allocation4 [shape = 'u8[8192]{0}', space=vmem, size = 0x2000, scoped, tag = 'input window, operand 2, single buffered']
    #allocation5 [shape = 's32[1]{0}', space=sflag, size = 0x4, scoped, tag = 'scoped memory for tpu_custom_call.1']
    #allocation6 [shape = 's32[1]{0}', space=sflag, size = 0x4, scoped, tag = 'scoped memory for tpu_custom_call.1']
    #allocation7 [shape = 'u8[8192]{0}', space=vmem, size = 0x2000, scoped, tag = 'output window, operand 0, single buffered']
    %10 = vsyncpa [#allocation5], 0
    %11 = vsyncpa [#allocation6], 0
    // Predicated region
    $region2: #{tpu_custom_call.1} parent=1 // pred_check
      _
    $region3: #{tpu_custom_call.1} parent=1 // pred_check_branch
      %13 = sbr.rel (0) target = $region5
    $region4: #{tpu_custom_call.1} parent=1 // pred_region
      _
    $region5: #{tpu_custom_call.1} parent=1 // pred_fallthru
      _
    // Predicated region
    $region6: #{tpu_custom_call.1} parent=1 // pred_check
      _
    $region7: #{tpu_custom_call.1} parent=1 // pred_check_branch
      %15 = sbr.rel (0) target = $region9
    $region8: #{tpu_custom_call.1} parent=1 // pred_region
      _
    $region9: #{tpu_custom_call.1} parent=1 // pred_fallthru
      _
    // Predicated region
    $region10: #{tpu_custom_call.1} parent=1 // pred_check
      _
    $region11: #{tpu_custom_call.1} parent=1 // pred_check_branch
      %17 = sbr.rel (0) target = $region13
    $region12: #{tpu_custom_call.1} parent=1 // pred_region
      %s19 = ssub.s32 256, 256
      %20 = vsyncadd [#allocation5], %s19
      %s22 = sshll.u32 [#allocation4], 4
      %s23 = int_to_ptr.vmem [resolvable:$true] %s22
      %25 = dma.hbm_to_vmem [thread:$0]  %s2, 256, %s23, [#allocation5]
    $region13: #{tpu_custom_call.1} parent=1 // pred_fallthru
      _
    // Predicated region
    $region14: #{tpu_custom_call.1} parent=1 // pred_check
      _
    $region15: #{tpu_custom_call.1} parent=1 // pred_check_branch
      %27 = sbr.rel (0) target = $region17
    $region16: #{tpu_custom_call.1} parent=1 // pred_region
      %28 = dma.done [#allocation5], 256
    $region17: #{tpu_custom_call.1} parent=1 // pred_fallthru
      _
    %s29 = sld [smem:[#allocation2]]
    %v30 = vld [vmem:[#allocation4] sm:$0xff]
    %v31 = vld [vmem:[#allocation4 + $0x8] sm:$0xff]
    %v32 = vstv %s29
    %v33 = vrcp.pop %v32
    %v34 = vmul.f32 %v30, %v33
    %v35 = vmul.f32 %v31, %v33
    %v36 = vround.ne.pseudo %v34
    %v37 = vround.ne.pseudo %v35
    %v38 = vmax.f32 %v36, -128.0
    %v39 = vmax.f32 %v37, -128.0
    %v40 = vmin.f32 %v38, 127.0
    %v41 = vmin.f32 %v39, 127.0
    %v42 = vmul.f32 %v40, %v32
    %v43 = vmul.f32 %v41, %v32
    %44 = vst [vmem:[#allocation7] sm:$0xff] %v42
    %45 = vst [vmem:[#allocation7 + $0x8] sm:$0xff] %v43
    // Predicated region
    $region18: #{tpu_custom_call.1} parent=1 // pred_check
      _
    $region19: #{tpu_custom_call.1} parent=1 // pred_check_branch
      %47 = sbr.rel (0) target = $region21
    $region20: #{tpu_custom_call.1} parent=1 // pred_region
      %s49 = ssub.s32 256, 256
      %50 = vsyncadd [#allocation6], %s49
      %s52 = sshll.u32 [#allocation7], 4
      %s53 = int_to_ptr.vmem [resolvable:$true] %s52
      %55 = dma.vmem_to_hbm [thread:$0]  %s53, 256, %s3, [#allocation6]
    $region21: #{tpu_custom_call.1} parent=1 // pred_fallthru
      _
    // Predicated region
    $region22: #{tpu_custom_call.1} parent=1 // pred_check
      _
    $region23: #{tpu_custom_call.1} parent=1 // pred_check_branch
      %57 = sbr.rel (0) target = $region25
    $region24: #{tpu_custom_call.1} parent=1 // pred_region
      %58 = dma.done [#allocation6], 256
    $region25: #{tpu_custom_call.1} parent=1 // pred_fallthru
      _
    %59 = vsyncpa [#allocation5], 1
    %60 = vsyncpa [#allocation6], 1

</llo_original>
